<compile_context>
chip_gen: v6e
topology: v6e:2x2x1
jax: 0.10.0
libtpu: 0.0.40
codegen_flags: <defaults>
</compile_context>

<pallas_src>
import functools

import jax
import jax.numpy as jnp
from jax import lax
from jax.experimental import pallas as pl
from jax.experimental.pallas import tpu as pltpu

HIDDEN     = 32    # model.config.hidden_size (synthetic, small)
TIME_DIM   = 32    # temporal_embedding: Linear(1, 32)
STOCK_DIM  = 16    # stock_embedding_dim
NUM_STOCKS = 10
NUM_LABELS = 3
CLS_HID    = 256   # classifier hidden width

COMBINED   = HIDDEN + TIME_DIM + STOCK_DIM   # 80
COMB_PAD   = 128                             # classifier K padded to one MXU pass
OUT_PAD    = 128                             # lane-dense output block width


def _hbert_head_kernel(cls_ref, time_ref, sidx_ref,
                       w_pool_ref, b_pool_ref,
                       w_attn_ref, b_attn_ref,
                       w_time_ref, b_time_ref,
                       stock_tab_ref,
                       w_c1_ref, b_c1_ref,
                       w_c2_ref, b_c2_ref,
                       out_ref, *, chunks):
    cls2d = cls_ref[...]                            # (TB*C, H) — flattened host-side
    rows, H = cls2d.shape
    tb = rows // chunks

    # pooler: Linear(H, H) + tanh on every chunk CLS vector (one 2-D MXU pass)
    pooled2d = jnp.tanh(
        jnp.dot(cls2d, w_pool_ref[...], preferred_element_type=jnp.float32)
        + b_pool_ref[...])

    # regroup chunks per example; sublane-only split, lane dim (H) untouched
    pooled = pooled2d.reshape(tb, chunks, H)        # (TB, C, H)

    # attention scores: VPU multiply + lane reduce (no N=1 MXU pass, no
    # (B*C,1)->(B,C) lane relayout)
    scores = (jnp.sum(pooled * w_attn_ref[...], axis=-1, keepdims=True)
              + b_attn_ref[...])                    # (TB, C, 1)
    m = jnp.max(scores, axis=1, keepdims=True)
    e = jnp.exp(scores - m)
    attn = e / jnp.sum(e, axis=1, keepdims=True)    # softmax over chunks
    text_emb = jnp.sum(pooled * attn, axis=1)       # (TB, H)

    # temporal embedding: K=1 "matmul" == broadcast outer product on the VPU
    time_emb = jnp.tanh(time_ref[...] * w_time_ref[...] + b_time_ref[...])   # (TB, 32)

    # stock embedding lookup as one-hot matmul (gather-free on TPU)
    iota = lax.broadcasted_iota(jnp.int32, (tb, NUM_STOCKS), 1)
    onehot = (iota == sidx_ref[...]).astype(jnp.float32)
    stock_emb = jnp.dot(onehot, stock_tab_ref[...],
                        preferred_element_type=jnp.float32)                  # (TB, 16)

    # classifier: single K=128 matmul over the zero-padded combined embedding
    # (concat lives in one vreg: text 0:32, time 32:64, stock 64:80, pad 80:128)
    combined = jnp.concatenate(
        [text_emb, time_emb, stock_emb,
         jnp.zeros((tb, COMB_PAD - COMBINED), jnp.float32)], axis=-1)        # (TB, 128)
    h1 = jnp.maximum(
        jnp.dot(combined, w_c1_ref[...], preferred_element_type=jnp.float32)
        + b_c1_ref[...], 0.0)                                                # (TB, 256)

    # lane-dense logits: (TB, 128) padded; wrapper slices [:, :NUM_LABELS]
    out_ref[...] = (jnp.dot(h1, w_c2_ref[...], preferred_element_type=jnp.float32)
                    + b_c2_ref[...])


def pack_params(params):
    """One-time layout prep: transpose / zero-pad weights to lane-friendly shapes."""
    return dict(
        w_pool=params['w_pool'], b_pool=params['b_pool'],
        w_attn_row=params['w_attn'].reshape(1, HIDDEN),                       # (1, H)
        b_attn=params['b_attn'],
        w_time=params['w_time'], b_time=params['b_time'],
        stock_table=params['stock_table'],
        w_c1=jnp.pad(params['w_c1'], ((0, COMB_PAD - COMBINED), (0, 0))),     # (128, 256)
        b_c1=params['b_c1'],
        w_c2=jnp.pad(params['w_c2'], ((0, 0), (0, OUT_PAD - NUM_LABELS))),    # (256, 128)
        b_c2=jnp.pad(params['b_c2'], ((0, 0), (0, OUT_PAD - NUM_LABELS))),    # (1, 128)
    )


def hbert_predict_head(cls_embeddings, time_values, stock_indices, packed):
    """cls_embeddings: (B, C, H) float32 — per-chunk BERT CLS hidden states.
       time_values:    (B,)       float32
       stock_indices:  (B,)       int32
    """
    B, C, H = cls_embeddings.shape
    assert H == HIDDEN

    # Batch tiling: one block when B is small; 128-example tiles otherwise so
    # the parallel grid shards across v7x's two TensorCores and overlaps DMA.
    tb = B if B <= 128 else 128
    nb = pl.cdiv(B, tb)
    bp = nb * tb
    if bp != B:                                    # pad batch to whole tiles
        pad = bp - B
        cls_embeddings = jnp.pad(cls_embeddings, ((0, pad), (0, 0), (0, 0)))
        time_values = jnp.pad(time_values, ((0, pad),))
        stock_indices = jnp.pad(stock_indices, ((0, pad),))

    cls2d = cls_embeddings.reshape(bp * C, H).astype(jnp.float32)   # free host reshape
    time2d = time_values.reshape(bp, 1).astype(jnp.float32)
    sidx2d = stock_indices.reshape(bp, 1).astype(jnp.int32)

    weights = (packed['w_pool'], packed['b_pool'],
               packed['w_attn_row'], packed['b_attn'],
               packed['w_time'], packed['b_time'],
               packed['stock_table'],
               packed['w_c1'], packed['b_c1'],
               packed['w_c2'], packed['b_c2'])

    data_specs = [
        pl.BlockSpec((tb * C, H), lambda i: (i, 0)),
        pl.BlockSpec((tb, 1), lambda i: (i, 0)),
        pl.BlockSpec((tb, 1), lambda i: (i, 0)),
    ]
    weight_specs = [pl.BlockSpec(w.shape, lambda i: (0, 0)) for w in weights]

    out = pl.pallas_call(
        functools.partial(_hbert_head_kernel, chunks=C),
        out_shape=jax.ShapeDtypeStruct((bp, OUT_PAD), jnp.float32),
        grid=(nb,),
        in_specs=data_specs + weight_specs,
        out_specs=pl.BlockSpec((tb, OUT_PAD), lambda i: (i, 0)),
        compiler_params=pltpu.CompilerParams(
            dimension_semantics=("parallel",)),
    )(cls2d, time2d, sidx2d, *weights)

    return out[:B, :NUM_LABELS]


def init_params(key):
    ks = jax.random.split(key, 8)
    def lin(k, fan_in, fan_out):
        s = 1.0 / jnp.sqrt(fan_in)
        return jax.random.uniform(k, (fan_in, fan_out), jnp.float32, -s, s)
    return dict(
        w_pool=lin(ks[0], HIDDEN, HIDDEN),    b_pool=jnp.zeros((1, HIDDEN), jnp.float32),
        w_attn=lin(ks[1], HIDDEN, 1),         b_attn=jnp.zeros((1, 1), jnp.float32),
        w_time=lin(ks[2], 1, TIME_DIM),       b_time=jnp.zeros((1, TIME_DIM), jnp.float32),
        stock_table=jax.random.normal(ks[3], (NUM_STOCKS, STOCK_DIM), jnp.float32),
        w_c1=lin(ks[4], COMBINED, CLS_HID),   b_c1=jnp.zeros((1, CLS_HID), jnp.float32),
        w_c2=lin(ks[5], CLS_HID, NUM_LABELS), b_c2=jnp.zeros((1, NUM_LABELS), jnp.float32),
    )


def _reference(cls_embeddings, time_values, stock_indices, p):
    pooled = jnp.tanh(cls_embeddings @ p['w_pool'] + p['b_pool'])
    scores = (pooled @ p['w_attn'] + p['b_attn'])[..., 0]
    attn = jax.nn.softmax(scores, axis=1)
    text = jnp.sum(pooled * attn[..., None], axis=1)
    time_emb = jnp.tanh(time_values[:, None] @ p['w_time'] + p['b_time'])
    stock_emb = p['stock_table'][stock_indices]
    combined = jnp.concatenate([text, time_emb, stock_emb], axis=1)
    h1 = jnp.maximum(combined @ p['w_c1'] + p['b_c1'], 0.0)
    return h1 @ p['w_c2'] + p['b_c2']


if __name__ == "__main__":
    key = jax.random.PRNGKey(0)
    k_par, k_cls, k_time, k_stk = jax.random.split(key, 4)

    B, C, H = 2, 4, HIDDEN  # batch=2 examples, 4 text chunks each, hidden=32
    params = init_params(k_par)
    packed = pack_params(params)   # layout prep done once; weights stay resident
    cls_embeddings = jax.random.normal(k_cls, (B, C, H), jnp.float32)
    time_values = jax.random.uniform(k_time, (B,), jnp.float32)
    stock_indices = jax.random.randint(k_stk, (B,), 0, NUM_STOCKS, jnp.int32)

    out = hbert_predict_head(cls_embeddings, time_values, stock_indices, packed)
    out = jax.block_until_ready(out)

    ref = _reference(cls_embeddings, time_values, stock_indices, params)
    assert out.shape == (B, NUM_LABELS)
    assert jnp.allclose(out, ref, atol=1e-4, rtol=1e-4), (out, ref)
    print("KERNEL_OK")
</pallas_src>

<mosaic_0001>
module attributes {stable_mosaic.version = 11 : i64} {
  func.func @_hbert_head_kernel(%arg0: i32, %arg1: memref<8x32xf32, #tpu.memory_space<vmem>>, %arg2: memref<2x1xf32, #tpu.memory_space<vmem>>, %arg3: memref<2x1xi32, #tpu.memory_space<vmem>>, %arg4: memref<32x32xf32, #tpu.memory_space<vmem>>, %arg5: memref<1x32xf32, #tpu.memory_space<vmem>>, %arg6: memref<1x32xf32, #tpu.memory_space<vmem>>, %arg7: memref<1x1xf32, #tpu.memory_space<vmem>>, %arg8: memref<1x32xf32, #tpu.memory_space<vmem>>, %arg9: memref<1x32xf32, #tpu.memory_space<vmem>>, %arg10: memref<10x16xf32, #tpu.memory_space<vmem>>, %arg11: memref<128x256xf32, #tpu.memory_space<vmem>>, %arg12: memref<1x256xf32, #tpu.memory_space<vmem>>, %arg13: memref<256x128xf32, #tpu.memory_space<vmem>>, %arg14: memref<1x128xf32, #tpu.memory_space<vmem>>, %arg15: memref<2x128xf32, #tpu.memory_space<vmem>>) attributes {dimension_semantics = [#tpu.dimension_semantics<parallel>], iteration_bounds = array<i64: 1>, scalar_prefetch = 0 : i64, scratch_operands = 0 : i64, tpu.core_type = #tpu.core_type<tc>, window_params = [{transform_indices = @transform_0, window_bounds = array<i64: 8, 32>}, {transform_indices = @transform_1, window_bounds = array<i64: 2, 1>}, {transform_indices = @transform_2, window_bounds = array<i64: 2, 1>}, {pipeline_mode = #tpu.pipeline_mode<synchronous>, transform_indices = @transform_3, window_bounds = array<i64: 32, 32>}, {pipeline_mode = #tpu.pipeline_mode<synchronous>, transform_indices = @transform_4, window_bounds = array<i64: 1, 32>}, {pipeline_mode = #tpu.pipeline_mode<synchronous>, transform_indices = @transform_5, window_bounds = array<i64: 1, 32>}, {pipeline_mode = #tpu.pipeline_mode<synchronous>, transform_indices = @transform_6, window_bounds = array<i64: 1, 1>}, {pipeline_mode = #tpu.pipeline_mode<synchronous>, transform_indices = @transform_7, window_bounds = array<i64: 1, 32>}, {pipeline_mode = #tpu.pipeline_mode<synchronous>, transform_indices = @transform_8, window_bounds = array<i64: 1, 32>}, {pipeline_mode = #tpu.pipeline_mode<synchronous>, transform_indices = @transform_9, window_bounds = array<i64: 10, 16>}, {pipeline_mode = #tpu.pipeline_mode<synchronous>, transform_indices = @transform_10, window_bounds = array<i64: 128, 256>}, {pipeline_mode = #tpu.pipeline_mode<synchronous>, transform_indices = @transform_11, window_bounds = array<i64: 1, 256>}, {pipeline_mode = #tpu.pipeline_mode<synchronous>, transform_indices = @transform_12, window_bounds = array<i64: 256, 128>}, {pipeline_mode = #tpu.pipeline_mode<synchronous>, transform_indices = @transform_13, window_bounds = array<i64: 1, 128>}, {transform_indices = @transform_14, window_bounds = array<i64: 2, 128>}]} {
    %c0 = arith.constant 0 : index
    %c0_0 = arith.constant 0 : index
    %0 = vector.load %arg1[%c0, %c0_0] : memref<8x32xf32, #tpu.memory_space<vmem>>, vector<8x32xf32>
    %c0_1 = arith.constant 0 : index
    %c0_2 = arith.constant 0 : index
    %1 = vector.load %arg4[%c0_1, %c0_2] : memref<32x32xf32, #tpu.memory_space<vmem>>, vector<32x32xf32>
    %cst = arith.constant dense<0.000000e+00> : vector<8x32xf32>
    %2 = tpu.matmul %0, %1, %cst {dimension_numbers = #tpu.dot_dimension_numbers<[1], [0], [0], [1], [0, 0, 1, 1], [], []>} : vector<8x32xf32>, vector<32x32xf32>, vector<8x32xf32> -> vector<8x32xf32>
    %c0_3 = arith.constant 0 : index
    %c0_4 = arith.constant 0 : index
    %3 = vector.load %arg5[%c0_3, %c0_4] : memref<1x32xf32, #tpu.memory_space<vmem>>, vector<1x32xf32>
    %4 = vector.broadcast %3 : vector<1x32xf32> to vector<8x32xf32>
    %5 = arith.addf %2, %4 : vector<8x32xf32>
    %6 = math.tanh %5 : vector<8x32xf32>
    %7 = vector.shape_cast %6 : vector<8x32xf32> to vector<2x4x32xf32>
    %c0_5 = arith.constant 0 : index
    %c0_6 = arith.constant 0 : index
    %8 = vector.load %arg6[%c0_5, %c0_6] : memref<1x32xf32, #tpu.memory_space<vmem>>, vector<1x32xf32>
    %9 = vector.shape_cast %8 : vector<1x32xf32> to vector<1x1x32xf32>
    %10 = vector.broadcast %9 : vector<1x1x32xf32> to vector<2x4x32xf32>
    %11 = arith.mulf %7, %10 : vector<2x4x32xf32>
    %cst_7 = arith.constant dense<0.000000e+00> : vector<2x4xf32>
    %12 = vector.multi_reduction <add>, %11, %cst_7 [2] : vector<2x4x32xf32> to vector<2x4xf32>
    %13 = vector.shape_cast %12 : vector<2x4xf32> to vector<2x4x1xf32>
    %c0_8 = arith.constant 0 : index
    %c0_9 = arith.constant 0 : index
    %14 = vector.load %arg7[%c0_8, %c0_9] : memref<1x1xf32, #tpu.memory_space<vmem>>, vector<1x1xf32>
    %15 = vector.shape_cast %14 : vector<1x1xf32> to vector<1x1x1xf32>
    %16 = vector.broadcast %15 : vector<1x1x1xf32> to vector<2x4x1xf32>
    %17 = arith.addf %13, %16 : vector<2x4x1xf32>
    %cst_10 = arith.constant dense<0xFF800000> : vector<2x1xf32>
    %18 = vector.multi_reduction <maximumf>, %17, %cst_10 [1] : vector<2x4x1xf32> to vector<2x1xf32>
    %19 = vector.shape_cast %18 : vector<2x1xf32> to vector<2x1x1xf32>
    %20 = vector.broadcast %19 : vector<2x1x1xf32> to vector<2x4x1xf32>
    %21 = arith.subf %17, %20 : vector<2x4x1xf32>
    %22 = math.exp %21 : vector<2x4x1xf32>
    %cst_11 = arith.constant dense<0.000000e+00> : vector<2x1xf32>
    %23 = vector.multi_reduction <add>, %22, %cst_11 [1] : vector<2x4x1xf32> to vector<2x1xf32>
    %24 = vector.shape_cast %23 : vector<2x1xf32> to vector<2x1x1xf32>
    %25 = vector.broadcast %24 : vector<2x1x1xf32> to vector<2x4x1xf32>
    %26 = arith.divf %22, %25 : vector<2x4x1xf32>
    %27 = vector.broadcast %26 : vector<2x4x1xf32> to vector<2x4x32xf32>
    %28 = arith.mulf %7, %27 : vector<2x4x32xf32>
    %cst_12 = arith.constant dense<0.000000e+00> : vector<2x32xf32>
    %29 = vector.multi_reduction <add>, %28, %cst_12 [1] : vector<2x4x32xf32> to vector<2x32xf32>
    %c0_13 = arith.constant 0 : index
    %c0_14 = arith.constant 0 : index
    %30 = vector.load %arg2[%c0_13, %c0_14] : memref<2x1xf32, #tpu.memory_space<vmem>>, vector<2x1xf32>
    %c0_15 = arith.constant 0 : index
    %c0_16 = arith.constant 0 : index
    %31 = vector.load %arg8[%c0_15, %c0_16] : memref<1x32xf32, #tpu.memory_space<vmem>>, vector<1x32xf32>
    %32 = vector.broadcast %30 : vector<2x1xf32> to vector<2x32xf32>
    %33 = vector.broadcast %31 : vector<1x32xf32> to vector<2x32xf32>
    %34 = arith.mulf %32, %33 : vector<2x32xf32>
    %c0_17 = arith.constant 0 : index
    %c0_18 = arith.constant 0 : index
    %35 = vector.load %arg9[%c0_17, %c0_18] : memref<1x32xf32, #tpu.memory_space<vmem>>, vector<1x32xf32>
    %36 = vector.broadcast %35 : vector<1x32xf32> to vector<2x32xf32>
    %37 = arith.addf %34, %36 : vector<2x32xf32>
    %38 = math.tanh %37 : vector<2x32xf32>
    %39 = tpu.iota {dimensions = array<i32: 1>} : vector<2x10xi32>
    %c0_19 = arith.constant 0 : index
    %c0_20 = arith.constant 0 : index
    %40 = vector.load %arg3[%c0_19, %c0_20] : memref<2x1xi32, #tpu.memory_space<vmem>>, vector<2x1xi32>
    %41 = vector.broadcast %40 : vector<2x1xi32> to vector<2x10xi32>
    %42 = arith.cmpi eq, %39, %41 : vector<2x10xi32>
    %43 = arith.extui %42 : vector<2x10xi1> to vector<2x10xi32>
    %44 = arith.sitofp %43 : vector<2x10xi32> to vector<2x10xf32>
    %c0_21 = arith.constant 0 : index
    %c0_22 = arith.constant 0 : index
    %45 = vector.load %arg10[%c0_21, %c0_22] : memref<10x16xf32, #tpu.memory_space<vmem>>, vector<10x16xf32>
    %cst_23 = arith.constant dense<0.000000e+00> : vector<2x16xf32>
    %46 = tpu.matmul %44, %45, %cst_23 {dimension_numbers = #tpu.dot_dimension_numbers<[1], [0], [0], [1], [0, 0, 1, 1], [], []>} : vector<2x10xf32>, vector<10x16xf32>, vector<2x16xf32> -> vector<2x16xf32>
    %cst_24 = arith.constant 0.000000e+00 : f32
    %47 = vector.broadcast %cst_24 : f32 to vector<2x48xf32>
    %48 = tpu.concatenate %29, %38, %46, %47 in 1 : vector<2x32xf32>, vector<2x32xf32>, vector<2x16xf32>, vector<2x48xf32> -> vector<2x128xf32>
    %c0_25 = arith.constant 0 : index
    %c0_26 = arith.constant 0 : index
    %49 = vector.load %arg11[%c0_25, %c0_26] : memref<128x256xf32, #tpu.memory_space<vmem>>, vector<128x256xf32>
    %cst_27 = arith.constant dense<0.000000e+00> : vector<2x256xf32>
    %50 = tpu.matmul %48, %49, %cst_27 {dimension_numbers = #tpu.dot_dimension_numbers<[1], [0], [0], [1], [0, 0, 1, 1], [], []>} : vector<2x128xf32>, vector<128x256xf32>, vector<2x256xf32> -> vector<2x256xf32>
    %c0_28 = arith.constant 0 : index
    %c0_29 = arith.constant 0 : index
    %51 = vector.load %arg12[%c0_28, %c0_29] : memref<1x256xf32, #tpu.memory_space<vmem>>, vector<1x256xf32>
    %52 = vector.broadcast %51 : vector<1x256xf32> to vector<2x256xf32>
    %53 = arith.addf %50, %52 : vector<2x256xf32>
    %cst_30 = arith.constant 0.000000e+00 : f32
    %54 = vector.broadcast %cst_30 : f32 to vector<2x256xf32>
    %55 = arith.maximumf %53, %54 : vector<2x256xf32>
    %c0_31 = arith.constant 0 : index
    %c0_32 = arith.constant 0 : index
    %56 = vector.load %arg13[%c0_31, %c0_32] : memref<256x128xf32, #tpu.memory_space<vmem>>, vector<256x128xf32>
    %cst_33 = arith.constant dense<0.000000e+00> : vector<2x128xf32>
    %57 = tpu.matmul %55, %56, %cst_33 {dimension_numbers = #tpu.dot_dimension_numbers<[1], [0], [0], [1], [0, 0, 1, 1], [], []>} : vector<2x256xf32>, vector<256x128xf32>, vector<2x128xf32> -> vector<2x128xf32>
    %c0_34 = arith.constant 0 : index
    %c0_35 = arith.constant 0 : index
    %58 = vector.load %arg14[%c0_34, %c0_35] : memref<1x128xf32, #tpu.memory_space<vmem>>, vector<1x128xf32>
    %59 = vector.broadcast %58 : vector<1x128xf32> to vector<2x128xf32>
    %60 = arith.addf %57, %59 : vector<2x128xf32>
    %c0_36 = arith.constant 0 : index
    %c0_37 = arith.constant 0 : index
    %61 = vector.load %arg15[%c0_36, %c0_37] : memref<2x128xf32, #tpu.memory_space<vmem>>, vector<2x128xf32>
    tpu.vector_store %arg15[%c0_36, %c0_37], %60 {strides = array<i32>} : memref<2x128xf32, #tpu.memory_space<vmem>>, vector<2x128xf32>,
    return
  }
  func.func @transform_0(%arg0: i32) -> (i32, i32) {
    %c0_i32 = arith.constant 0 : i32
    %c0_i32_0 = arith.constant 0 : i32
    return %arg0, %c0_i32 : i32, i32
  }
  func.func @transform_1(%arg0: i32) -> (i32, i32) {
    %c0_i32 = arith.constant 0 : i32
    %c0_i32_0 = arith.constant 0 : i32
    return %arg0, %c0_i32 : i32, i32
  }
  func.func @transform_2(%arg0: i32) -> (i32, i32) {
    %c0_i32 = arith.constant 0 : i32
    %c0_i32_0 = arith.constant 0 : i32
    return %arg0, %c0_i32 : i32, i32
  }
  func.func @transform_3(%arg0: i32) -> (i32, i32) {
    %c0_i32 = arith.constant 0 : i32
    %c0_i32_0 = arith.constant 0 : i32
    %c0_i32_1 = arith.constant 0 : i32
    return %c0_i32, %c0_i32_0 : i32, i32
  }
  func.func @transform_4(%arg0: i32) -> (i32, i32) {
    %c0_i32 = arith.constant 0 : i32
    %c0_i32_0 = arith.constant 0 : i32
    %c0_i32_1 = arith.constant 0 : i32
    return %c0_i32, %c0_i32_0 : i32, i32
  }
  func.func @transform_5(%arg0: i32) -> (i32, i32) {
    %c0_i32 = arith.constant 0 : i32
    %c0_i32_0 = arith.constant 0 : i32
    %c0_i32_1 = arith.constant 0 : i32
    return %c0_i32, %c0_i32_0 : i32, i32
  }
  func.func @transform_6(%arg0: i32) -> (i32, i32) {
    %c0_i32 = arith.constant 0 : i32
    %c0_i32_0 = arith.constant 0 : i32
    %c0_i32_1 = arith.constant 0 : i32
    return %c0_i32, %c0_i32_0 : i32, i32
  }
  func.func @transform_7(%arg0: i32) -> (i32, i32) {
    %c0_i32 = arith.constant 0 : i32
    %c0_i32_0 = arith.constant 0 : i32
    %c0_i32_1 = arith.constant 0 : i32
    return %c0_i32, %c0_i32_0 : i32, i32
  }
  func.func @transform_8(%arg0: i32) -> (i32, i32) {
    %c0_i32 = arith.constant 0 : i32
    %c0_i32_0 = arith.constant 0 : i32
    %c0_i32_1 = arith.constant 0 : i32
    return %c0_i32, %c0_i32_0 : i32, i32
  }
  func.func @transform_9(%arg0: i32) -> (i32, i32) {
    %c0_i32 = arith.constant 0 : i32
    %c0_i32_0 = arith.constant 0 : i32
    %c0_i32_1 = arith.constant 0 : i32
    return %c0_i32, %c0_i32_0 : i32, i32
  }
  func.func @transform_10(%arg0: i32) -> (i32, i32) {
    %c0_i32 = arith.constant 0 : i32
    %c0_i32_0 = arith.constant 0 : i32
    %c0_i32_1 = arith.constant 0 : i32
    return %c0_i32, %c0_i32_0 : i32, i32
  }
  func.func @transform_11(%arg0: i32) -> (i32, i32) {
    %c0_i32 = arith.constant 0 : i32
    %c0_i32_0 = arith.constant 0 : i32
    %c0_i32_1 = arith.constant 0 : i32
    return %c0_i32, %c0_i32_0 : i32, i32
  }
  func.func @transform_12(%arg0: i32) -> (i32, i32) {
    %c0_i32 = arith.constant 0 : i32
    %c0_i32_0 = arith.constant 0 : i32
    %c0_i32_1 = arith.constant 0 : i32
    return %c0_i32, %c0_i32_0 : i32, i32
  }
  func.func @transform_13(%arg0: i32) -> (i32, i32) {
    %c0_i32 = arith.constant 0 : i32
    %c0_i32_0 = arith.constant 0 : i32
    %c0_i32_1 = arith.constant 0 : i32
    return %c0_i32, %c0_i32_0 : i32, i32
  }
  func.func @transform_14(%arg0: i32) -> (i32, i32) {
    %c0_i32 = arith.constant 0 : i32
    %c0_i32_0 = arith.constant 0 : i32
    return %arg0, %c0_i32 : i32, i32
  }
}

</mosaic_0001>

<llo_original>
// kernel: tpu_custom_call.1
$region0: #{tpu_custom_call.1}
  #allocation0 [shape = 'u32[]', space=smem, size = 0x4, offset = 0x4, fixed_abs, tag = 'smem constant byte address 0x4 - core index']
  #allocation1 [shape = 'u32[144,128]{1,0:T(1,128)}', space=vmem, size = 0x12000, scoped, tag = 'internal scratch']
  #allocation2 [shape = 'f32[1,1]{1,0:T(1,128)S(1)}', space=vmem, size = 0x200, scoped, tag = 'scoped memory for tpu_custom_call.1']
  %s0 = inlined_call_operand.hbm [shape: f32[8,32], index: 0, kind: input, shape index: {}]
  %s1 = inlined_call_operand.vmem [shape: f32[2,1], index: 1, kind: input, shape index: {}]
  %s2 = inlined_call_operand.vmem [shape: s32[2,1], index: 2, kind: input, shape index: {}]
  %s3 = inlined_call_operand.hbm [shape: f32[32,32], index: 3, kind: input, shape index: {}]
  %s4 = inlined_call_operand.vmem [shape: f32[1,32], index: 4, kind: input, shape index: {}]
  %s5 = inlined_call_operand.vmem [shape: f32[1,32], index: 5, kind: input, shape index: {}]
  %s6 = inlined_call_operand.<no memory space> [shape: f32[1,1], index: 6, kind: input, shape index: {}]
  %s7 = inlined_call_operand.vmem [shape: f32[1,32], index: 7, kind: input, shape index: {}]
  %s8 = inlined_call_operand.vmem [shape: f32[1,32], index: 8, kind: input, shape index: {}]
  %s9 = inlined_call_operand.vmem [shape: f32[10,16], index: 9, kind: input, shape index: {}]
  %s10 = inlined_call_operand.hbm [shape: f32[128,256], index: 10, kind: input, shape index: {}]
  %s11 = inlined_call_operand.vmem [shape: f32[1,256], index: 11, kind: input, shape index: {}]
  %s12 = inlined_call_operand.hbm [shape: f32[256,128], index: 12, kind: input, shape index: {}]
  %s13 = inlined_call_operand.vmem [shape: f32[1,128], index: 13, kind: input, shape index: {}]
  %s14 = inlined_call_operand.hbm [shape: f32[2,128], index: 14, kind: output, shape index: {}]
  %s15 = sld [smem:[#allocation0]]
  $region82: #{tpu_custom_call.1} parent=0
    _
  %s17 = ssub.s32 1, %s15
  %s18 = scalar_select 0, %s17, %s15
  %v19 = vstv %s6
  %20 = vst [vmem:[#allocation2] sm:$0x1] %v19
  $region1: #{tpu_custom_call.1} parent=0
    #allocation3 [shape = 'u8[4096]{0}', space=vmem, size = 0x1000, scoped, tag = 'input window, operand 0, single buffered']
    #allocation4 [shape = 's32[1]{0}', space=sflag, size = 0x4, scoped, tag = 'scoped memory for tpu_custom_call.1']
    #allocation5 [shape = 's32[1]{0}', space=sflag, size = 0x4, scoped, tag = 'scoped memory for tpu_custom_call.1']
    #allocation6 [shape = 'u8[16384]{0}', space=vmem, size = 0x4000, scoped, tag = 'input window, operand 3, single buffered']
    #allocation7 [shape = 's32[1]{0}', space=sflag, size = 0x4, scoped, tag = 'scoped memory for tpu_custom_call.1']
    #allocation8 [shape = 'u8[131072]{0}', space=vmem, size = 0x20000, scoped, tag = 'input window, operand 10, single buffered']
    #allocation9 [shape = 'u8[131072]{0}', space=vmem, size = 0x20000, scoped, tag = 'input window, operand 12, single buffered']
    #allocation10 [shape = 's32[1]{0}', space=sflag, size = 0x4, scoped, tag = 'scoped memory for tpu_custom_call.1']
    #allocation11 [shape = 'u8[1024]{0}', space=vmem, size = 0x400, scoped, tag = 'output window, operand 0, single buffered']
    %21 = vsyncpa [#allocation4], 0
    %22 = vsyncpa [#allocation7], 0
    %23 = vsyncpa [#allocation10], 0
    %24 = vsyncpa [#allocation5], 0
    // Predicated region
    $region2: #{tpu_custom_call.1} parent=1 // pred_check
      _
    $region3: #{tpu_custom_call.1} parent=1 // pred_check_branch
      %26 = sbr.rel (0) target = $region5
    $region4: #{tpu_custom_call.1} parent=1 // pred_region
      %s28 = ssub.s32 128, 128
      %29 = vsyncadd [#allocation4], %s28
      %s31 = sshll.u32 [#allocation3], 4
      %s32 = int_to_ptr.vmem [resolvable:$true] %s31
      %34 = dma.hbm_to_vmem [thread:$0]  %s0, 128, %s32, [#allocation4]
    $region5: #{tpu_custom_call.1} parent=1 // pred_fallthru
      _
    // Predicated region
    $region6: #{tpu_custom_call.1} parent=1 // pred_check
      _
    $region7: #{tpu_custom_call.1} parent=1 // pred_check_branch
      %36 = sbr.rel (0) target = $region9
    $region8: #{tpu_custom_call.1} parent=1 // pred_region
      _
    $region9: #{tpu_custom_call.1} parent=1 // pred_fallthru
      _
    // Predicated region
    $region10: #{tpu_custom_call.1} parent=1 // pred_check
      _
    $region11: #{tpu_custom_call.1} parent=1 // pred_check_branch
      %38 = sbr.rel (0) target = $region13
    $region12: #{tpu_custom_call.1} parent=1 // pred_region
      _
    $region13: #{tpu_custom_call.1} parent=1 // pred_fallthru
      _
    // Predicated region
    $region14: #{tpu_custom_call.1} parent=1 // pred_check
      _
    $region15: #{tpu_custom_call.1} parent=1 // pred_check_branch
      %40 = sbr.rel (0) target = $region17
    $region16: #{tpu_custom_call.1} parent=1 // pred_region
      %s42 = ssub.s32 512, 512
      %43 = vsyncadd [#allocation7], %s42
      %s44 = sshll.u32 [#allocation6], 4
      %s45 = int_to_ptr.vmem [resolvable:$true] %s44
      %50 = dma.hbm_to_vmem [thread:$0]  %s3, 512, %s45, [#allocation7], 128, 128, 8
    $region17: #{tpu_custom_call.1} parent=1 // pred_fallthru
      _
    // Predicated region
    $region18: #{tpu_custom_call.1} parent=1 // pred_check
      _
    $region19: #{tpu_custom_call.1} parent=1 // pred_check_branch
      %52 = sbr.rel (0) target = $region21
    $region20: #{tpu_custom_call.1} parent=1 // pred_region
      _
    $region21: #{tpu_custom_call.1} parent=1 // pred_fallthru
      _
    // Predicated region
    $region22: #{tpu_custom_call.1} parent=1 // pred_check
      _
    $region23: #{tpu_custom_call.1} parent=1 // pred_check_branch
      %54 = sbr.rel (0) target = $region25
    $region24: #{tpu_custom_call.1} parent=1 // pred_region
      _
    $region25: #{tpu_custom_call.1} parent=1 // pred_fallthru
      _
    // Predicated region
    $region26: #{tpu_custom_call.1} parent=1 // pred_check
      _
    $region27: #{tpu_custom_call.1} parent=1 // pred_check_branch
      %56 = sbr.rel (0) target = $region29
    $region28: #{tpu_custom_call.1} parent=1 // pred_region
      _
    $region29: #{tpu_custom_call.1} parent=1 // pred_fallthru
      _
    // Predicated region
    $region30: #{tpu_custom_call.1} parent=1 // pred_check
      _
    $region31: #{tpu_custom_call.1} parent=1 // pred_check_branch
      %58 = sbr.rel (0) target = $region33
    $region32: #{tpu_custom_call.1} parent=1 // pred_region
      _
    $region33: #{tpu_custom_call.1} parent=1 // pred_fallthru
      _
    // Predicated region
    $region34: #{tpu_custom_call.1} parent=1 // pred_check
      _
    $region35: #{tpu_custom_call.1} parent=1 // pred_check_branch
      %60 = sbr.rel (0) target = $region37
    $region36: #{tpu_custom_call.1} parent=1 // pred_region
      _
    $region37: #{tpu_custom_call.1} parent=1 // pred_fallthru
      _
    // Predicated region
    $region38: #{tpu_custom_call.1} parent=1 // pred_check
      _
    $region39: #{tpu_custom_call.1} parent=1 // pred_check_branch
      %62 = sbr.rel (0) target = $region41
    $region40: #{tpu_custom_call.1} parent=1 // pred_region
      _
    $region41: #{tpu_custom_call.1} parent=1 // pred_fallthru
      _
    // Predicated region
    $region42: #{tpu_custom_call.1} parent=1 // pred_check
      _
    $region43: #{tpu_custom_call.1} parent=1 // pred_check_branch
      %64 = sbr.rel (0) target = $region45
    $region44: #{tpu_custom_call.1} parent=1 // pred_region
      %s66 = ssub.s32 4096, 4096
      %67 = vsyncadd [#allocation7], %s66
      %s68 = sshll.u32 [#allocation8], 4
      %s69 = int_to_ptr.vmem [resolvable:$true] %s68
      %74 = dma.hbm_to_vmem [thread:$0]  %s10, 4096, %s69, [#allocation7], 256, 256, 16
    $region45: #{tpu_custom_call.1} parent=1 // pred_fallthru
      _
    // Predicated region
    $region46: #{tpu_custom_call.1} parent=1 // pred_check
      _
    $region47: #{tpu_custom_call.1} parent=1 // pred_check_branch
      %76 = sbr.rel (0) target = $region49
    $region48: #{tpu_custom_call.1} parent=1 // pred_region
      _
    $region49: #{tpu_custom_call.1} parent=1 // pred_fallthru
      _
    // Predicated region
    $region50: #{tpu_custom_call.1} parent=1 // pred_check
      _
    $region51: #{tpu_custom_call.1} parent=1 // pred_check_branch
      %78 = sbr.rel (0) target = $region53
    $region52: #{tpu_custom_call.1} parent=1 // pred_region
      %s80 = ssub.s32 4096, 4096
      %81 = vsyncadd [#allocation10], %s80
      %s82 = sshll.u32 [#allocation9], 4
      %s83 = int_to_ptr.vmem [resolvable:$true] %s82
      %88 = dma.hbm_to_vmem [thread:$0]  %s12, 4096, %s83, [#allocation10], 128, 128, 8
    $region53: #{tpu_custom_call.1} parent=1 // pred_fallthru
      _
    // Predicated region
    $region54: #{tpu_custom_call.1} parent=1 // pred_check
      _
    $region55: #{tpu_custom_call.1} parent=1 // pred_check_branch
      %90 = sbr.rel (0) target = $region57
    $region56: #{tpu_custom_call.1} parent=1 // pred_region
      _
    $region57: #{tpu_custom_call.1} parent=1 // pred_fallthru
      _
    // Predicated region
    $region58: #{tpu_custom_call.1} parent=1 // pred_check
      _
    $region59: #{tpu_custom_call.1} parent=1 // pred_check_branch
      %92 = sbr.rel (0) target = $region61
    $region60: #{tpu_custom_call.1} parent=1 // pred_region
      %93 = dma.done [#allocation4], 128
    $region61: #{tpu_custom_call.1} parent=1 // pred_fallthru
      _
    // Predicated region
    $region62: #{tpu_custom_call.1} parent=1 // pred_check
      _
    $region63: #{tpu_custom_call.1} parent=1 // pred_check_branch
      %95 = sbr.rel (0) target = $region65
    $region64: #{tpu_custom_call.1} parent=1 // pred_region
      %96 = dma.done [#allocation7], 512
    $region65: #{tpu_custom_call.1} parent=1 // pred_fallthru
      _
    // Predicated region
    $region66: #{tpu_custom_call.1} parent=1 // pred_check
      _
    $region67: #{tpu_custom_call.1} parent=1 // pred_check_branch
      %98 = sbr.rel (0) target = $region69
    $region68: #{tpu_custom_call.1} parent=1 // pred_region
      %99 = dma.done [#allocation7], 4096
    $region69: #{tpu_custom_call.1} parent=1 // pred_fallthru
      _
    // Predicated region
    $region70: #{tpu_custom_call.1} parent=1 // pred_check
      _
    $region71: #{tpu_custom_call.1} parent=1 // pred_check_branch
      %101 = sbr.rel (0) target = $region73
    $region72: #{tpu_custom_call.1} parent=1 // pred_region
      %102 = dma.done [#allocation10], 4096
    $region73: #{tpu_custom_call.1} parent=1 // pred_fallthru
      _
    %v103 = vld [vmem:[#allocation3] sm:$0xff]
    %v104 = vld [vmem:[#allocation6] sm:$0xff]
    %v105 = vld [vmem:[#allocation6 + $0x8] sm:$0xff]
    %v106 = vld [vmem:[#allocation6 + $0x10] sm:$0xff]
    %v107 = vld [vmem:[#allocation6 + $0x18] sm:$0xff]
    %v108 = vld [vmem:[%s4] sm:$0x1]
    %v110 = vlaneseq
    %v111 = vshrl.u32 %v110, 7
    %v112 = vsub.s32 0, %v111
    %v113 = vrot.slane %v108, %v112
    %vm115 = vcmask 261120
    %v117 = vsel %vm115, %v103, 0
    %119 = vmatprep.subr.mxu0 0.0
    %120 = vmatpush1.msra.mxu0 0.0
    %121 = vmatprep.subr.mxu0 0.0
    %122 = vmatpush1.msra.mxu0 0.0
    %123 = vmatprep.subr.mxu0 0.0
    %124 = vmatpush1.msra.mxu0 0.0
    %125 = vmatprep.subr.mxu0 0.0
    %126 = vmatpush1.msra.mxu0 0.0
    %127 = vmatprep.subr.mxu0 0.0
    %128 = vmatpush1.msra.mxu0 0.0
    %129 = vmatprep.subr.mxu0 0.0
    %130 = vmatpush1.msra.mxu0 0.0
    %131 = vmatprep.subr.mxu0 0.0
    %132 = vmatpush1.msra.mxu0 0.0
    %133 = vmatprep.subr.mxu0 0.0
    %134 = vmatpush1.msra.mxu0 0.0
    %135 = vmatprep.subr.mxu0 0.0
    %136 = vmatpush1.msra.mxu0 0.0
    %137 = vmatprep.subr.mxu0 0.0
    %138 = vmatpush1.msra.mxu0 0.0
    %139 = vmatprep.subr.mxu0 0.0
    %140 = vmatpush1.msra.mxu0 0.0
    %141 = vmatprep.subr.mxu0 0.0
    %142 = vmatpush1.msra.mxu0 0.0
    %143 = vmatprep.subr.mxu0 0.0
    %144 = vmatpush1.msra.mxu0 %v107
    %145 = vmatprep.subr.mxu0 0.0
    %146 = vmatpush1.msra.mxu0 %v106
    %147 = vmatprep.subr.mxu0 0.0
    %148 = vmatpush1.msra.mxu0 %v105
    %149 = vmatprep.subr.mxu0 0.0
    %150 = vmatpush1.msra.mxu0 %v104
    %151 = vmatprep.subr.mxu0 0.0
    %152 = vmatpush2.msra.mxu0 0.0
    %153 = vmatprep.subr.mxu0 0.0
    %154 = vmatpush2.msra.mxu0 0.0
    %155 = vmatprep.subr.mxu0 0.0
    %156 = vmatpush2.msra.mxu0 0.0
    %157 = vmatprep.subr.mxu0 0.0
    %158 = vmatpush2.msra.mxu0 0.0
    %159 = vmatprep.subr.mxu0 0.0
    %160 = vmatpush2.msra.mxu0 0.0
    %161 = vmatprep.subr.mxu0 0.0
    %162 = vmatpush2.msra.mxu0 0.0
    %163 = vmatprep.subr.mxu0 0.0
    %164 = vmatpush2.msra.mxu0 0.0
    %165 = vmatprep.subr.mxu0 0.0
    %166 = vmatpush2.msra.mxu0 0.0
    %167 = vmatprep.subr.mxu0 0.0
    %168 = vmatpush2.msra.mxu0 0.0
    %169 = vmatprep.subr.mxu0 0.0
    %170 = vmatpush2.msra.mxu0 0.0
    %171 = vmatprep.subr.mxu0 0.0
    %172 = vmatpush2.msra.mxu0 0.0
    %173 = vmatprep.subr.mxu0 0.0
    %174 = vmatpush2.msra.mxu0 0.0
    %175 = vmatprep.subr.mxu0 0.0
    %176 = vmatpush2.msra.mxu0 0.0
    %177 = vmatprep.subr.mxu0 0.0
    %178 = vmatpush2.msra.mxu0 0.0
    %179 = vmatprep.subr.mxu0 0.0
    %180 = vmatpush2.msra.mxu0 0.0
    %181 = vmatprep.subr.mxu0 0.0
    %182 = vmatpush2.msra.mxu0 0.0
    %183 = vmatprep.mubr.f32.mxu0 0.0
    %184 = vmatmul.mubr.f32.gmra.mxu0 %v117
    %v185 = vpop.f32.mrf.mxu0
    %v186 = vadd.f32 %v113, %v185
    %v187 = vpop.f32.mrf.mxu0
    %188 = vdwg.mxu0
    %v189 = vtanh.pop %v186
    %v191 = vcombine.high %v189, %v189
    %v193 = vld [vmem:[%s5] sm:$0x1]
    %v195 = vlaneseq
    %v196 = vshrl.u32 %v195, 7
    %v197 = vsub.s32 0, %v196
    %v198 = vrot.slane %v193, %v197
    %v200 = vmul.f32 %v189, %v198
    %v201 = vmul.f32 %v191, %v198
    %vm202 = vcmask 257024
    %v203 = vsel %vm202, %v200, 0.0
    %204 = vadd.xlane.f32.xlu0 %v203
    %v205 = vpop.xlane.xlu0 %204
    %v206 = vsel %vm202, %v201, 0.0
    %207 = vadd.xlane.f32.xlu0 %v206
    %v208 = vpop.xlane.xlu0 %207
    %v209 = vld [vmem:[#allocation2] sm:$0x1]
    %v211 = vlaneseq
    %v212 = vshrl.u32 %v211, 7
    %v213 = vsub.s32 0, %v212
    %v214 = vrot.slane %v209, %v213
    %v216 = vadd.f32 %v205, %v214
    %v217 = vadd.f32 %v208, %v214
    %vm218 = vcmask 3072
    %v219 = vsel %vm218, %v216, -inf
    %v220 = vrot.slane %v219, 4
    %v221 = vmax.f32 %v219, %v220
    %v222 = vrot.slane %v221, 2
    %v223 = vmax.f32 %v221, %v222
    %v224 = vrot.slane %v223, 1
    %v225 = vmax.f32 %v223, %v224
    %v226 = vsel %vm218, %v217, -inf
    %v227 = vrot.slane %v226, 4
    %v228 = vmax.f32 %v226, %v227
    %v229 = vrot.slane %v228, 2
    %v230 = vmax.f32 %v228, %v229
    %v231 = vrot.slane %v230, 1
    %v232 = vmax.f32 %v230, %v231
    %v233 = vsub.f32 %v216, %v225
    %v234 = vsub.f32 %v217, %v232
    %v235 = vmul.f32 %v233, 1.442695
    %v236 = vpow.pop %v235
    %v237 = vmul.f32 %v234, 1.442695
    %v238 = vpow.pop %v237
    %v239 = vsel %vm218, %v236, 0.0
    %v240 = vrot.slane %v239, 4
    %v241 = vadd.f32 %v239, %v240
    %v242 = vrot.slane %v241, 2
    %v243 = vadd.f32 %v241, %v242
    %v244 = vrot.slane %v243, 1
    %v245 = vadd.f32 %v243, %v244
    %v246 = vsel %vm218, %v238, 0.0
    %v247 = vrot.slane %v246, 4
    %v248 = vadd.f32 %v246, %v247
    %v249 = vrot.slane %v248, 2
    %v250 = vadd.f32 %v248, %v249
    %v251 = vrot.slane %v250, 1
    %v252 = vadd.f32 %v250, %v251
    %v253 = vrcp.pop %v245
    %v254 = vmul.f32 %v236, %v253
    %v255 = vrcp.pop %v252
    %v256 = vmul.f32 %v238, %v255
    %258 = vset.pattern.permute.xlu0 0
    %259 = vperm.xlu0 %258, %v254
    %v260 = vpop.permute.xlu0 %259
    %263 = vset.pattern.permute.xlu0 0
    %264 = vperm.xlu0 %263, %v256
    %v265 = vpop.permute.xlu0 %264
    %v267 = vmul.f32 %v189, %v260
    %v268 = vmul.f32 %v191, %v265
    %v269 = vsel %vm202, %v267, 0.0
    %v270 = vrot.slane %v269, 4
    %v271 = vadd.f32 %v269, %v270
    %v272 = vrot.slane %v271, 2
    %v273 = vadd.f32 %v271, %v272
    %v274 = vrot.slane %v273, 1
    %v275 = vadd.f32 %v273, %v274
    %v276 = vsel %vm202, %v268, 0.0
    %v277 = vrot.slane %v276, 4
    %v278 = vadd.f32 %v276, %v277
    %v279 = vrot.slane %v278, 2
    %v280 = vadd.f32 %v278, %v279
    %v281 = vrot.slane %v280, 1
    %v282 = vadd.f32 %v280, %v281
    %v283 = vld [vmem:[%s1] sm:$0x3]
    %v284 = vld [vmem:[%s7] sm:$0x1]
    %286 = vset.pattern.permute.xlu0 0
    %287 = vperm.xlu0 %286, %v283
    %v288 = vpop.permute.xlu0 %287
    %v291 = vlaneseq
    %v292 = vshrl.u32 %v291, 7
    %v293 = vsub.s32 0, %v292
    %v294 = vrot.slane %v284, %v293
    %v296 = vmul.f32 %v288, %v294
    %v297 = vld [vmem:[%s8] sm:$0x1]
    %v299 = vlaneseq
    %v300 = vshrl.u32 %v299, 7
    %v301 = vsub.s32 0, %v300
    %v302 = vrot.slane %v297, %v301
    %v304 = vadd.f32 %v296, %v302
    %v305 = vtanh.pop %v304
    %v306 = vlaneseq
    %v307 = vand.u32 %v306, 127
    %v308 = vld [vmem:[%s2] sm:$0x3]
    %309 = vset.pattern.permute.xlu0 0
    %310 = vperm.xlu0 %309, %v308
    %v311 = vpop.permute.xlu0 %310
    %vm312 = vcmp.eq.s32.totalorder %v307, %v311
    %v313 = vsel %vm312, 1, 0
    %v314 = vcvt.s32.f32 %v313
    %v315 = vld [vmem:[%s9] sm:$0xff]
    %v316 = vld [vmem:[%s9 + $0x8] sm:$0x3]
    %vm317 = vcmask 80896
    %v319 = vsel %vm317, %v314, 0
    %vm321 = vcmask 1041408
    %v323 = vsel %vm321, %v316, 0
    %325 = vmatprep.subr.mxu0 0.0
    %326 = vmatpush1.msra.mxu0 0.0
    %327 = vmatprep.subr.mxu0 0.0
    %328 = vmatpush1.msra.mxu0 0.0
    %329 = vmatprep.subr.mxu0 0.0
    %330 = vmatpush1.msra.mxu0 0.0
    %331 = vmatprep.subr.mxu0 0.0
    %332 = vmatpush1.msra.mxu0 0.0
    %333 = vmatprep.subr.mxu0 0.0
    %334 = vmatpush1.msra.mxu0 0.0
    %335 = vmatprep.subr.mxu0 0.0
    %336 = vmatpush1.msra.mxu0 0.0
    %337 = vmatprep.subr.mxu0 0.0
    %338 = vmatpush1.msra.mxu0 0.0
    %339 = vmatprep.subr.mxu0 0.0
    %340 = vmatpush1.msra.mxu0 0.0
    %341 = vmatprep.subr.mxu0 0.0
    %342 = vmatpush1.msra.mxu0 0.0
    %343 = vmatprep.subr.mxu0 0.0
    %344 = vmatpush1.msra.mxu0 0.0
    %345 = vmatprep.subr.mxu0 0.0
    %346 = vmatpush1.msra.mxu0 0.0
    %347 = vmatprep.subr.mxu0 0.0
    %348 = vmatpush1.msra.mxu0 0.0
    %349 = vmatprep.subr.mxu0 0.0
    %350 = vmatpush1.msra.mxu0 0.0
    %351 = vmatprep.subr.mxu0 0.0
    %352 = vmatpush1.msra.mxu0 0.0
    %353 = vmatprep.subr.mxu0 0.0
    %354 = vmatpush1.msra.mxu0 %v323
    %355 = vmatprep.subr.mxu0 0.0
    %356 = vmatpush1.msra.mxu0 %v315
    %357 = vmatprep.subr.mxu0 0.0
    %358 = vmatpush2.msra.mxu0 0.0
    %359 = vmatprep.subr.mxu0 0.0
    %360 = vmatpush2.msra.mxu0 0.0
    %361 = vmatprep.subr.mxu0 0.0
    %362 = vmatpush2.msra.mxu0 0.0
    %363 = vmatprep.subr.mxu0 0.0
    %364 = vmatpush2.msra.mxu0 0.0
    %365 = vmatprep.subr.mxu0 0.0
    %366 = vmatpush2.msra.mxu0 0.0
    %367 = vmatprep.subr.mxu0 0.0
    %368 = vmatpush2.msra.mxu0 0.0
    %369 = vmatprep.subr.mxu0 0.0
    %370 = vmatpush2.msra.mxu0 0.0
    %371 = vmatprep.subr.mxu0 0.0
    %372 = vmatpush2.msra.mxu0 0.0
    %373 = vmatprep.subr.mxu0 0.0
    %374 = vmatpush2.msra.mxu0 0.0
    %375 = vmatprep.subr.mxu0 0.0
    %376 = vmatpush2.msra.mxu0 0.0
    %377 = vmatprep.subr.mxu0 0.0
    %378 = vmatpush2.msra.mxu0 0.0
    %379 = vmatprep.subr.mxu0 0.0
    %380 = vmatpush2.msra.mxu0 0.0
    %381 = vmatprep.subr.mxu0 0.0
    %382 = vmatpush2.msra.mxu0 0.0
    %383 = vmatprep.subr.mxu0 0.0
    %384 = vmatpush2.msra.mxu0 0.0
    %385 = vmatprep.subr.mxu0 0.0
    %386 = vmatpush2.msra.mxu0 0.0
    %387 = vmatprep.subr.mxu0 0.0
    %388 = vmatpush2.msra.mxu0 0.0
    %389 = vmatprep.mubr.f32.mxu0 0.0
    %390 = vmatmul.mubr.f32.gmra.mxu0 %v319
    %v391 = vpop.f32.mrf.mxu0
    %v392 = vadd.f32 0.0, %v391
    %v393 = vpop.f32.mrf.mxu0
    %394 = vdwg.mxu0
    %vm397 = vcmask 1041409
    %v398 = vsel %vm397, %v282, %v275
    %401 = vrot.lane.b32.xlu0 %v305, 32
    %v402 = vpop.permute.xlu0 %401
    %405 = vrot.lane.b32.xlu0 %v392, 64
    %v406 = vpop.permute.xlu0 %405
    %v408 = vsel %vm115, %v398, %v402
    %vm409 = vcmask 523264
    %v410 = vsel %vm409, %v408, %v406
    %vm411 = vcmask 654336
    %v412 = vsel %vm411, %v410, 0.0
    %v413 = vld [vmem:[#allocation8] sm:$0xff]
    %v414 = vld [vmem:[#allocation8 + $0x8] sm:$0xff]
    %v415 = vld [vmem:[#allocation8 + $0x10] sm:$0xff]
    %v416 = vld [vmem:[#allocation8 + $0x18] sm:$0xff]
    %v417 = vld [vmem:[#allocation8 + $0x20] sm:$0xff]
    %v418 = vld [vmem:[#allocation8 + $0x28] sm:$0xff]
    %v419 = vld [vmem:[#allocation8 + $0x30] sm:$0xff]
    %v420 = vld [vmem:[#allocation8 + $0x38] sm:$0xff]
    %v421 = vld [vmem:[#allocation8 + $0x40] sm:$0xff]
    %v422 = vld [vmem:[#allocation8 + $0x48] sm:$0xff]
    %v423 = vld [vmem:[#allocation8 + $0x50] sm:$0xff]
    %v424 = vld [vmem:[#allocation8 + $0x58] sm:$0xff]
    %v425 = vld [vmem:[#allocation8 + $0x60] sm:$0xff]
    %v426 = vld [vmem:[#allocation8 + $0x68] sm:$0xff]
    %v427 = vld [vmem:[#allocation8 + $0x70] sm:$0xff]
    %v428 = vld [vmem:[#allocation8 + $0x78] sm:$0xff]
    %v429 = vld [vmem:[#allocation8 + $0x80] sm:$0xff]
    %v430 = vld [vmem:[#allocation8 + $0x88] sm:$0xff]
    %v431 = vld [vmem:[#allocation8 + $0x90] sm:$0xff]
    %v432 = vld [vmem:[#allocation8 + $0x98] sm:$0xff]
    %v433 = vld [vmem:[#allocation8 + $0xa0] sm:$0xff]
    %v434 = vld [vmem:[#allocation8 + $0xa8] sm:$0xff]
    %v435 = vld [vmem:[#allocation8 + $0xb0] sm:$0xff]
    %v436 = vld [vmem:[#allocation8 + $0xb8] sm:$0xff]
    %v437 = vld [vmem:[#allocation8 + $0xc0] sm:$0xff]
    %v438 = vld [vmem:[#allocation8 + $0xc8] sm:$0xff]
    %v439 = vld [vmem:[#allocation8 + $0xd0] sm:$0xff]
    %v440 = vld [vmem:[#allocation8 + $0xd8] sm:$0xff]
    %v441 = vld [vmem:[#allocation8 + $0xe0] sm:$0xff]
    %v442 = vld [vmem:[#allocation8 + $0xe8] sm:$0xff]
    %v443 = vld [vmem:[#allocation8 + $0xf0] sm:$0xff]
    %v444 = vld [vmem:[#allocation8 + $0xf8] sm:$0xff]
    %v445 = vld [vmem:[%s11] sm:$0x3]
    %v447 = vlaneseq
    %v448 = vshrl.u32 %v447, 7
    %v449 = vsub.s32 0, %v448
    %v450 = vrot.slane %v445, %v449
    %v451 = vlaneseq
    %v452 = vshrl.u32 %v451, 7
    %v453 = vsub.s32 1, %v452
    %v454 = vrot.slane %v445, %v453
    %457 = vmatprep.subr.mxu0 %v444
    %458 = vmatpush1.msra.mxu0 %v443
    %459 = vmatprep.subr.mxu0 %v442
    %460 = vmatpush1.msra.mxu0 %v441
    %461 = vmatprep.subr.mxu0 %v440
    %462 = vmatpush1.msra.mxu0 %v439
    %463 = vmatprep.subr.mxu0 %v438
    %464 = vmatpush1.msra.mxu0 %v437
    %465 = vmatprep.subr.mxu0 %v436
    %466 = vmatpush1.msra.mxu0 %v435
    %467 = vmatprep.subr.mxu0 %v434
    %468 = vmatpush1.msra.mxu0 %v433
    %469 = vmatprep.subr.mxu0 %v432
    %470 = vmatpush1.msra.mxu0 %v431
    %471 = vmatprep.subr.mxu0 %v430
    %472 = vmatpush1.msra.mxu0 %v429
    %473 = vmatprep.subr.mxu0 %v428
    %474 = vmatpush1.msra.mxu0 %v427
    %475 = vmatprep.subr.mxu0 %v426
    %476 = vmatpush1.msra.mxu0 %v425
    %477 = vmatprep.subr.mxu0 %v424
    %478 = vmatpush1.msra.mxu0 %v423
    %479 = vmatprep.subr.mxu0 %v422
    %480 = vmatpush1.msra.mxu0 %v421
    %481 = vmatprep.subr.mxu0 %v420
    %482 = vmatpush1.msra.mxu0 %v419
    %483 = vmatprep.subr.mxu0 %v418
    %484 = vmatpush1.msra.mxu0 %v417
    %485 = vmatprep.subr.mxu0 %v416
    %486 = vmatpush1.msra.mxu0 %v415
    %487 = vmatprep.subr.mxu0 %v414
    %488 = vmatpush1.msra.mxu0 %v413
    %489 = vmatprep.subr.mxu0 0.0
    %490 = vmatpush2.msra.mxu0 0.0
    %491 = vmatprep.subr.mxu0 0.0
    %492 = vmatpush2.msra.mxu0 0.0
    %493 = vmatprep.subr.mxu0 0.0
    %494 = vmatpush2.msra.mxu0 0.0
    %495 = vmatprep.subr.mxu0 0.0
    %496 = vmatpush2.msra.mxu0 0.0
    %497 = vmatprep.subr.mxu0 0.0
    %498 = vmatpush2.msra.mxu0 0.0
    %499 = vmatprep.subr.mxu0 0.0
    %500 = vmatpush2.msra.mxu0 0.0
    %501 = vmatprep.subr.mxu0 0.0
    %502 = vmatpush2.msra.mxu0 0.0
    %503 = vmatprep.subr.mxu0 0.0
    %504 = vmatpush2.msra.mxu0 0.0
    %505 = vmatprep.subr.mxu0 0.0
    %506 = vmatpush2.msra.mxu0 0.0
    %507 = vmatprep.subr.mxu0 0.0
    %508 = vmatpush2.msra.mxu0 0.0
    %509 = vmatprep.subr.mxu0 0.0
    %510 = vmatpush2.msra.mxu0 0.0
    %511 = vmatprep.subr.mxu0 0.0
    %512 = vmatpush2.msra.mxu0 0.0
    %513 = vmatprep.subr.mxu0 0.0
    %514 = vmatpush2.msra.mxu0 0.0
    %515 = vmatprep.subr.mxu0 0.0
    %516 = vmatpush2.msra.mxu0 0.0
    %517 = vmatprep.subr.mxu0 0.0
    %518 = vmatpush2.msra.mxu0 0.0
    %519 = vmatprep.subr.mxu0 0.0
    %520 = vmatpush2.msra.mxu0 0.0
    %521 = vmatprep.mubr.f32.mxu0 0.0
    %522 = vmatmul.mubr.f32.gmra.mxu0 %v412
    %v523 = vpop.f32.mrf.mxu0
    %v524 = vadd.f32 %v450, %v523
    %v525 = vpop.f32.mrf.mxu0
    %v526 = vadd.f32 %v454, %v525
    %527 = vdwg.mxu0
    %v528 = vmax.f32 %v524, 0.0
    %v529 = vmax.f32 %v526, 0.0
    %v530 = vld [vmem:[#allocation9] sm:$0xff]
    %v531 = vld [vmem:[#allocation9 + $0x8] sm:$0xff]
    %v532 = vld [vmem:[#allocation9 + $0x10] sm:$0xff]
    %v533 = vld [vmem:[#allocation9 + $0x18] sm:$0xff]
    %v534 = vld [vmem:[#allocation9 + $0x20] sm:$0xff]
    %v535 = vld [vmem:[#allocation9 + $0x28] sm:$0xff]
    %v536 = vld [vmem:[#allocation9 + $0x30] sm:$0xff]
    %v537 = vld [vmem:[#allocation9 + $0x38] sm:$0xff]
    %v538 = vld [vmem:[#allocation9 + $0x40] sm:$0xff]
    %v539 = vld [vmem:[#allocation9 + $0x48] sm:$0xff]
    %v540 = vld [vmem:[#allocation9 + $0x50] sm:$0xff]
    %v541 = vld [vmem:[#allocation9 + $0x58] sm:$0xff]
    %v542 = vld [vmem:[#allocation9 + $0x60] sm:$0xff]
    %v543 = vld [vmem:[#allocation9 + $0x68] sm:$0xff]
    %v544 = vld [vmem:[#allocation9 + $0x70] sm:$0xff]
    %v545 = vld [vmem:[#allocation9 + $0x78] sm:$0xff]
    %v546 = vld [vmem:[#allocation9 + $0x80] sm:$0xff]
    %v547 = vld [vmem:[#allocation9 + $0x88] sm:$0xff]
    %v548 = vld [vmem:[#allocation9 + $0x90] sm:$0xff]
    %v549 = vld [vmem:[#allocation9 + $0x98] sm:$0xff]
    %v550 = vld [vmem:[#allocation9 + $0xa0] sm:$0xff]
    %v551 = vld [vmem:[#allocation9 + $0xa8] sm:$0xff]
    %v552 = vld [vmem:[#allocation9 + $0xb0] sm:$0xff]
    %v553 = vld [vmem:[#allocation9 + $0xb8] sm:$0xff]
    %v554 = vld [vmem:[#allocation9 + $0xc0] sm:$0xff]
    %v555 = vld [vmem:[#allocation9 + $0xc8] sm:$0xff]
    %v556 = vld [vmem:[#allocation9 + $0xd0] sm:$0xff]
    %v557 = vld [vmem:[#allocation9 + $0xd8] sm:$0xff]
    %v558 = vld [vmem:[#allocation9 + $0xe0] sm:$0xff]
    %v559 = vld [vmem:[#allocation9 + $0xe8] sm:$0xff]
    %v560 = vld [vmem:[#allocation9 + $0xf0] sm:$0xff]
    %v561 = vld [vmem:[#allocation9 + $0xf8] sm:$0xff]
    %v562 = vld [vmem:[%s13] sm:$0x1]
    %v564 = vlaneseq
    %v565 = vshrl.u32 %v564, 7
    %v566 = vsub.s32 0, %v565
    %v567 = vrot.slane %v562, %v566
    %569 = vmatprep.subr.mxu0 0.0
    %570 = vmatpush1.msra.mxu0 %v545
    %571 = vmatprep.subr.mxu0 0.0
    %572 = vmatpush1.msra.mxu0 %v544
    %573 = vmatprep.subr.mxu0 0.0
    %574 = vmatpush1.msra.mxu0 %v543
    %575 = vmatprep.subr.mxu0 0.0
    %576 = vmatpush1.msra.mxu0 %v542
    %577 = vmatprep.subr.mxu0 0.0
    %578 = vmatpush1.msra.mxu0 %v541
    %579 = vmatprep.subr.mxu0 0.0
    %580 = vmatpush1.msra.mxu0 %v540
    %581 = vmatprep.subr.mxu0 0.0
    %582 = vmatpush1.msra.mxu0 %v539
    %583 = vmatprep.subr.mxu0 0.0
    %584 = vmatpush1.msra.mxu0 %v538
    %585 = vmatprep.subr.mxu0 0.0
    %586 = vmatpush1.msra.mxu0 %v537
    %587 = vmatprep.subr.mxu0 0.0
    %588 = vmatpush1.msra.mxu0 %v536
    %589 = vmatprep.subr.mxu0 0.0
    %590 = vmatpush1.msra.mxu0 %v535
    %591 = vmatprep.subr.mxu0 0.0
    %592 = vmatpush1.msra.mxu0 %v534
    %593 = vmatprep.subr.mxu0 0.0
    %594 = vmatpush1.msra.mxu0 %v533
    %595 = vmatprep.subr.mxu0 0.0
    %596 = vmatpush1.msra.mxu0 %v532
    %597 = vmatprep.subr.mxu0 0.0
    %598 = vmatpush1.msra.mxu0 %v531
    %599 = vmatprep.subr.mxu0 0.0
    %600 = vmatpush1.msra.mxu0 %v530
    %601 = vmatprep.subr.mxu0 0.0
    %602 = vmatpush2.msra.mxu0 %v561
    %603 = vmatprep.subr.mxu0 0.0
    %604 = vmatpush2.msra.mxu0 %v560
    %605 = vmatprep.subr.mxu0 0.0
    %606 = vmatpush2.msra.mxu0 %v559
    %607 = vmatprep.subr.mxu0 0.0
    %608 = vmatpush2.msra.mxu0 %v558
    %609 = vmatprep.subr.mxu0 0.0
    %610 = vmatpush2.msra.mxu0 %v557
    %611 = vmatprep.subr.mxu0 0.0
    %612 = vmatpush2.msra.mxu0 %v556
    %613 = vmatprep.subr.mxu0 0.0
    %614 = vmatpush2.msra.mxu0 %v555
    %615 = vmatprep.subr.mxu0 0.0
    %616 = vmatpush2.msra.mxu0 %v554
    %617 = vmatprep.subr.mxu0 0.0
    %618 = vmatpush2.msra.mxu0 %v553
    %619 = vmatprep.subr.mxu0 0.0
    %620 = vmatpush2.msra.mxu0 %v552
    %621 = vmatprep.subr.mxu0 0.0
    %622 = vmatpush2.msra.mxu0 %v551
    %623 = vmatprep.subr.mxu0 0.0
    %624 = vmatpush2.msra.mxu0 %v550
    %625 = vmatprep.subr.mxu0 0.0
    %626 = vmatpush2.msra.mxu0 %v549
    %627 = vmatprep.subr.mxu0 0.0
    %628 = vmatpush2.msra.mxu0 %v548
    %629 = vmatprep.subr.mxu0 0.0
    %630 = vmatpush2.msra.mxu0 %v547
    %631 = vmatprep.subr.mxu0 0.0
    %632 = vmatpush2.msra.mxu0 %v546
    %633 = vmatprep.mubr.f32.mxu0 %v529
    %634 = vmatmul.mubr.f32.gmra.mxu0 %v528
    %v635 = vpop.f32.mrf.mxu0
    %v636 = vadd.f32 %v567, %v635
    %v637 = vpop.f32.mrf.mxu0
    %638 = vdwg.mxu0
    %639 = vst [vmem:[#allocation11] sm:$0x3] %v636
    // Predicated region
    $region74: #{tpu_custom_call.1} parent=1 // pred_check
      _
    $region75: #{tpu_custom_call.1} parent=1 // pred_check_branch
      %641 = sbr.rel (0) target = $region77
    $region76: #{tpu_custom_call.1} parent=1 // pred_region
      %s643 = ssub.s32 32, 32
      %644 = vsyncadd [#allocation5], %s643
      %s646 = sshll.u32 [#allocation11], 4
      %s647 = int_to_ptr.vmem [resolvable:$true] %s646
      %649 = dma.vmem_to_hbm [thread:$0]  %s647, 32, %s14, [#allocation5]
    $region77: #{tpu_custom_call.1} parent=1 // pred_fallthru
      _
    // Predicated region
    $region78: #{tpu_custom_call.1} parent=1 // pred_check
      _
    $region79: #{tpu_custom_call.1} parent=1 // pred_check_branch
      %651 = sbr.rel (0) target = $region81
    $region80: #{tpu_custom_call.1} parent=1 // pred_region
      %652 = dma.done [#allocation5], 32
    $region81: #{tpu_custom_call.1} parent=1 // pred_fallthru
      _
    %653 = vsyncpa [#allocation4], 1
    %654 = vsyncpa [#allocation7], 1
    %655 = vsyncpa [#allocation10], 1
    %656 = vsyncpa [#allocation5], 1

</llo_original>
